<compile_context>
chip_gen: v5e
topology: v5e:2x2
jax: 0.10.0
libtpu: 0.0.40
codegen_flags: <defaults>
</compile_context>

<pallas_src>
import jax
import jax.numpy as jnp
from jax.experimental import pallas as pl
from jax.experimental.pallas import tpu as pltpu


def _round_up(x: int, m: int) -> int:
    return (x + m - 1) // m * m


# ----------------------------------------------------------------------------- kernel

def make_kernel(n_obs: int, n_act: int, n_hidden: int, offs):
    """offs[l] = (8-aligned) row offset of fc layer l's weight inside the packed slab."""
    H = n_hidden
    n_fc = len(offs)                 # number of Linear layers inside the fc MLP
    n_in = n_obs + n_act

    def kernel(x_ref, a_ref, wfc_ref, wih_ref, misc_ref, out_ref):
        misc = misc_ref[...]                       # (n_fc+3, 4H): biases, gate bias, w_out, b_out

        # ---- fc MLP on cat([x, a]) ----
        # cat((x, a), 1) @ W0  ==  x @ W0[:n_obs] + a @ W0[n_obs:]   (fused concat, no copy)
        w0 = wfc_ref[offs[0]:offs[0] + n_in, :]
        h = (jnp.dot(x_ref[...], w0[:n_obs, :], preferred_element_type=jnp.float32)
             + jnp.dot(a_ref[...], w0[n_obs:, :], preferred_element_type=jnp.float32)
             + misc[0, :H][None, :])
        h = jnp.maximum(h, 0.0)
        for l in range(1, n_fc):
            wl = wfc_ref[offs[l]:offs[l] + H, :]
            h = jnp.dot(h, wl, preferred_element_type=jnp.float32) + misc[l, :H][None, :]
            h = jnp.maximum(h, 0.0)                # hidden relu / outer nonlinearity after fc

        # ---- single LSTM step with zero initial (h0, c0) ----
        # h0 = 0  =>  h0 @ W_hh == 0 (term dropped);  c0 = 0  =>  f * c0 == 0 (forget gate unused)
        # b_ih + b_hh is pre-folded into misc[n_fc, :].
        gates = (jnp.dot(h, wih_ref[...], preferred_element_type=jnp.float32)
                 + misc[n_fc, :][None, :])         # (bt, 4H), PyTorch gate order i, f, g, o
        i_g = jax.nn.sigmoid(gates[:, 0:H])
        g_g = jnp.tanh(gates[:, 2 * H:3 * H])
        o_g = jax.nn.sigmoid(gates[:, 3 * H:4 * H])
        h_lstm = o_g * jnp.tanh(i_g * g_g)         # c = i*g since c0 == 0

        # ---- output Linear(H -> 1): VPU multiply + lane reduction instead of an N=1 MXU pass
        w_out = misc[n_fc + 1, :H][None, :]
        q = jnp.sum(h_lstm * w_out, axis=1, keepdims=True) + misc[n_fc + 2, 0]
        out_ref[...] = q

    return kernel


# ----------------------------------------------------------------------------- packing

def _pack_params(params, n_obs: int, n_act: int):
    """Pack all parameters into 3 operands: fc-weight slab, LSTM W_ih, misc slab."""
    H = params["w_ih"].shape[0]
    n_fc = len(params["fc_w"])
    in_sizes = [n_obs + n_act] + [H] * (n_fc - 1)

    # 8-aligned row offsets so every in-kernel ref slice starts on a sublane boundary.
    offs, off = [], 0
    for s in in_sizes:
        offs.append(off)
        off += _round_up(s, 8)
    wfc = jnp.zeros((off, H), jnp.float32)
    for o, W in zip(offs, params["fc_w"]):
        wfc = wfc.at[o:o + W.shape[0], :].set(W)

    # misc rows: [fc biases (cols :H)] x n_fc, [b_ih + b_hh (4H)], [w_out row (:H)], [b_out (0)]
    misc = jnp.zeros((n_fc + 3, 4 * H), jnp.float32)
    for l, b in enumerate(params["fc_b"]):
        misc = misc.at[l, :H].set(b)
    misc = misc.at[n_fc, :].set(params["b_ih"] + params["b_hh"])
    misc = misc.at[n_fc + 1, :H].set(params["w_out"][:, 0])
    misc = misc.at[n_fc + 2, 0].set(params["b_out"][0])
    return wfc, misc, offs


# ----------------------------------------------------------------------------- wrapper

def fc_lstm_sa_q(state, action, params, *, batch_tile: int = 256):
    """q(state, action) for FCLSTMSAQFunction; batch rows are independent -> tiled batch grid."""
    B, n_obs = state.shape
    n_act = action.shape[1]
    H = params["w_ih"].shape[0]

    wfc, misc, offs = _pack_params(params, n_obs, n_act)

    bt = min(batch_tile, _round_up(B, 8))          # batch tile, multiple of 8 sublanes
    Bp = _round_up(B, bt)
    if Bp != B:
        pad = Bp - B
        state = jnp.pad(state, ((0, pad), (0, 0)))
        action = jnp.pad(action, ((0, pad), (0, 0)))

    kernel = make_kernel(n_obs, n_act, H, offs)
    out = pl.pallas_call(
        kernel,
        out_shape=jax.ShapeDtypeStruct((Bp, 1), jnp.float32),
        grid=(Bp // bt,),
        in_specs=[
            pl.BlockSpec((bt, n_obs), lambda i: (i, 0)),
            pl.BlockSpec((bt, n_act), lambda i: (i, 0)),
            pl.BlockSpec(wfc.shape, lambda i: (0, 0)),
            pl.BlockSpec(params["w_ih"].shape, lambda i: (0, 0)),
            pl.BlockSpec(misc.shape, lambda i: (0, 0)),
        ],
        out_specs=pl.BlockSpec((bt, 1), lambda i: (i, 0)),
        compiler_params=pltpu.CompilerParams(dimension_semantics=("parallel",)),
    )(state, action, wfc, params["w_ih"], misc)
    return out[:B]


# ----------------------------------------------------------------------------- init + reference

def _lecun_normal(key, fan_in, fan_out, scale=1.0):
    return scale * jax.random.normal(key, (fan_in, fan_out), jnp.float32) / jnp.sqrt(float(fan_in))


def init_params(key, n_obs, n_act, n_hidden, n_hidden_layers, last_wscale=1.0):
    H = n_hidden
    n_in = n_obs + n_act
    n_fc = n_hidden_layers + 1
    in_sizes = [n_in] + [H] * n_hidden_layers
    keys = jax.random.split(key, 2 * n_fc + 3)

    fc_w, fc_b = [], []
    for l in range(n_fc):
        fc_w.append(_lecun_normal(keys[2 * l], in_sizes[l], H))
        bound = 1.0 / float(in_sizes[l]) ** 0.5           # PyTorch nn.Linear default bias init
        fc_b.append(jax.random.uniform(keys[2 * l + 1], (H,), jnp.float32, -bound, bound))

    w_ih = _lecun_normal(keys[2 * n_fc], H, 4 * H)        # stored (input, 4H): x @ W_ih
    w_hh = _lecun_normal(keys[2 * n_fc + 1], H, 4 * H)
    b_ih = jnp.zeros((4 * H,), jnp.float32)               # nn.init.zeros_ per module
    b_hh = jnp.zeros((4 * H,), jnp.float32)
    w_out = _lecun_normal(keys[2 * n_fc + 2], H, 1, scale=last_wscale)
    b_out = jnp.zeros((1,), jnp.float32)
    return dict(fc_w=fc_w, fc_b=fc_b, w_ih=w_ih, w_hh=w_hh,
                b_ih=b_ih, b_hh=b_hh, w_out=w_out, b_out=b_out)


def reference(state, action, p):
    """Pure-JAX reference (full LSTM-step math with explicit zero initial state)."""
    H = p["w_ih"].shape[0]
    h = jnp.concatenate([state, action], axis=1)
    for W, b in zip(p["fc_w"], p["fc_b"]):
        h = jnp.maximum(h @ W + b, 0.0)
    B = h.shape[0]
    h0 = jnp.zeros((B, H), jnp.float32)
    c0 = jnp.zeros((B, H), jnp.float32)
    gates = h @ p["w_ih"] + p["b_ih"] + h0 @ p["w_hh"] + p["b_hh"]
    i_g, f_g, g_g, o_g = jnp.split(gates, 4, axis=1)
    i_g, f_g, o_g = jax.nn.sigmoid(i_g), jax.nn.sigmoid(f_g), jax.nn.sigmoid(o_g)
    c = f_g * c0 + i_g * jnp.tanh(g_g)
    h_lstm = o_g * jnp.tanh(c)
    return h_lstm @ p["w_out"] + p["b_out"]


if __name__ == "__main__":
    B, N_DIM_OBS, N_DIM_ACTION = 8, 16, 4
    N_HIDDEN, N_HIDDEN_LAYERS = 32, 2

    key = jax.random.PRNGKey(0)
    k_s, k_a, k_p = jax.random.split(key, 3)
    state = jax.random.normal(k_s, (B, N_DIM_OBS), jnp.float32)
    action = jax.random.normal(k_a, (B, N_DIM_ACTION), jnp.float32)
    params = init_params(k_p, N_DIM_OBS, N_DIM_ACTION, N_HIDDEN, N_HIDDEN_LAYERS)

    q = fc_lstm_sa_q(state, action, params)
    q = jax.block_until_ready(q)

    q_ref = reference(state, action, params)
    assert q.shape == (B, 1)
    assert bool(jnp.allclose(q, q_ref, atol=1e-4, rtol=1e-4)), "mismatch vs reference"

    print("KERNEL_OK")
</pallas_src>

<mosaic_0001>
module attributes {stable_mosaic.version = 11 : i64} {
  func.func @kernel(%arg0: i32, %arg1: memref<8x16xf32, #tpu.memory_space<vmem>>, %arg2: memref<8x4xf32, #tpu.memory_space<vmem>>, %arg3: memref<88x32xf32, #tpu.memory_space<vmem>>, %arg4: memref<32x128xf32, #tpu.memory_space<vmem>>, %arg5: memref<6x128xf32, #tpu.memory_space<vmem>>, %arg6: memref<8x1xf32, #tpu.memory_space<vmem>>) attributes {dimension_semantics = [#tpu.dimension_semantics<parallel>], iteration_bounds = array<i64: 1>, scalar_prefetch = 0 : i64, scratch_operands = 0 : i64, tpu.core_type = #tpu.core_type<tc>, window_params = [{transform_indices = @transform_0, window_bounds = array<i64: 8, 16>}, {transform_indices = @transform_1, window_bounds = array<i64: 8, 4>}, {pipeline_mode = #tpu.pipeline_mode<synchronous>, transform_indices = @transform_2, window_bounds = array<i64: 88, 32>}, {pipeline_mode = #tpu.pipeline_mode<synchronous>, transform_indices = @transform_3, window_bounds = array<i64: 32, 128>}, {pipeline_mode = #tpu.pipeline_mode<synchronous>, transform_indices = @transform_4, window_bounds = array<i64: 6, 128>}, {transform_indices = @transform_5, window_bounds = array<i64: 8, 1>}]} {
    %c0 = arith.constant 0 : index
    %c0_0 = arith.constant 0 : index
    %0 = vector.load %arg5[%c0, %c0_0] : memref<6x128xf32, #tpu.memory_space<vmem>>, vector<6x128xf32>
    %c0_1 = arith.constant 0 : index
    %c0_2 = arith.constant 0 : index
    %1 = vector.load %arg3[%c0_1, %c0_2] : memref<88x32xf32, #tpu.memory_space<vmem>>, vector<20x32xf32>
    %c0_3 = arith.constant 0 : index
    %c0_4 = arith.constant 0 : index
    %2 = vector.load %arg1[%c0_3, %c0_4] : memref<8x16xf32, #tpu.memory_space<vmem>>, vector<8x16xf32>
    %3 = vector.extract_strided_slice %1 {offsets = [0, 0], sizes = [16, 32], strides = [1, 1]} : vector<20x32xf32> to vector<16x32xf32>
    %cst = arith.constant dense<0.000000e+00> : vector<8x32xf32>
    %4 = tpu.matmul %2, %3, %cst {dimension_numbers = #tpu.dot_dimension_numbers<[1], [0], [0], [1], [0, 0, 1, 1], [], []>} : vector<8x16xf32>, vector<16x32xf32>, vector<8x32xf32> -> vector<8x32xf32>
    %c0_5 = arith.constant 0 : index
    %c0_6 = arith.constant 0 : index
    %5 = vector.load %arg2[%c0_5, %c0_6] : memref<8x4xf32, #tpu.memory_space<vmem>>, vector<8x4xf32>
    %6 = vector.extract_strided_slice %1 {offsets = [16, 0], sizes = [4, 32], strides = [1, 1]} : vector<20x32xf32> to vector<4x32xf32>
    %cst_7 = arith.constant dense<0.000000e+00> : vector<8x32xf32>
    %7 = tpu.matmul %5, %6, %cst_7 {dimension_numbers = #tpu.dot_dimension_numbers<[1], [0], [0], [1], [0, 0, 1, 1], [], []>} : vector<8x4xf32>, vector<4x32xf32>, vector<8x32xf32> -> vector<8x32xf32>
    %8 = arith.addf %4, %7 : vector<8x32xf32>
    %9 = vector.extract_strided_slice %0 {offsets = [0, 0], sizes = [1, 32], strides = [1, 1]} : vector<6x128xf32> to vector<1x32xf32>
    %10 = vector.shape_cast %9 : vector<1x32xf32> to vector<32xf32>
    %11 = vector.shape_cast %10 : vector<32xf32> to vector<1x32xf32>
    %12 = vector.broadcast %11 : vector<1x32xf32> to vector<8x32xf32>
    %13 = arith.addf %8, %12 : vector<8x32xf32>
    %cst_8 = arith.constant 0.000000e+00 : f32
    %14 = vector.broadcast %cst_8 : f32 to vector<8x32xf32>
    %15 = arith.maximumf %13, %14 : vector<8x32xf32>
    %c24 = arith.constant 24 : index
    %c0_9 = arith.constant 0 : index
    %16 = vector.load %arg3[%c24, %c0_9] : memref<88x32xf32, #tpu.memory_space<vmem>>, vector<32x32xf32>
    %cst_10 = arith.constant dense<0.000000e+00> : vector<8x32xf32>
    %17 = tpu.matmul %15, %16, %cst_10 {dimension_numbers = #tpu.dot_dimension_numbers<[1], [0], [0], [1], [0, 0, 1, 1], [], []>} : vector<8x32xf32>, vector<32x32xf32>, vector<8x32xf32> -> vector<8x32xf32>
    %18 = vector.extract_strided_slice %0 {offsets = [1, 0], sizes = [1, 32], strides = [1, 1]} : vector<6x128xf32> to vector<1x32xf32>
    %19 = vector.shape_cast %18 : vector<1x32xf32> to vector<32xf32>
    %20 = vector.shape_cast %19 : vector<32xf32> to vector<1x32xf32>
    %21 = vector.broadcast %20 : vector<1x32xf32> to vector<8x32xf32>
    %22 = arith.addf %17, %21 : vector<8x32xf32>
    %cst_11 = arith.constant 0.000000e+00 : f32
    %23 = vector.broadcast %cst_11 : f32 to vector<8x32xf32>
    %24 = arith.maximumf %22, %23 : vector<8x32xf32>
    %c56 = arith.constant 56 : index
    %c0_12 = arith.constant 0 : index
    %25 = vector.load %arg3[%c56, %c0_12] : memref<88x32xf32, #tpu.memory_space<vmem>>, vector<32x32xf32>
    %cst_13 = arith.constant dense<0.000000e+00> : vector<8x32xf32>
    %26 = tpu.matmul %24, %25, %cst_13 {dimension_numbers = #tpu.dot_dimension_numbers<[1], [0], [0], [1], [0, 0, 1, 1], [], []>} : vector<8x32xf32>, vector<32x32xf32>, vector<8x32xf32> -> vector<8x32xf32>
    %27 = vector.extract_strided_slice %0 {offsets = [2, 0], sizes = [1, 32], strides = [1, 1]} : vector<6x128xf32> to vector<1x32xf32>
    %28 = vector.shape_cast %27 : vector<1x32xf32> to vector<32xf32>
    %29 = vector.shape_cast %28 : vector<32xf32> to vector<1x32xf32>
    %30 = vector.broadcast %29 : vector<1x32xf32> to vector<8x32xf32>
    %31 = arith.addf %26, %30 : vector<8x32xf32>
    %cst_14 = arith.constant 0.000000e+00 : f32
    %32 = vector.broadcast %cst_14 : f32 to vector<8x32xf32>
    %33 = arith.maximumf %31, %32 : vector<8x32xf32>
    %c0_15 = arith.constant 0 : index
    %c0_16 = arith.constant 0 : index
    %34 = vector.load %arg4[%c0_15, %c0_16] : memref<32x128xf32, #tpu.memory_space<vmem>>, vector<32x128xf32>
    %cst_17 = arith.constant dense<0.000000e+00> : vector<8x128xf32>
    %35 = tpu.matmul %33, %34, %cst_17 {dimension_numbers = #tpu.dot_dimension_numbers<[1], [0], [0], [1], [0, 0, 1, 1], [], []>} : vector<8x32xf32>, vector<32x128xf32>, vector<8x128xf32> -> vector<8x128xf32>
    %36 = vector.extract_strided_slice %0 {offsets = [3, 0], sizes = [1, 128], strides = [1, 1]} : vector<6x128xf32> to vector<1x128xf32>
    %37 = vector.shape_cast %36 : vector<1x128xf32> to vector<128xf32>
    %38 = vector.shape_cast %37 : vector<128xf32> to vector<1x128xf32>
    %39 = vector.broadcast %38 : vector<1x128xf32> to vector<8x128xf32>
    %40 = arith.addf %35, %39 : vector<8x128xf32>
    %41 = vector.extract_strided_slice %40 {offsets = [0, 0], sizes = [8, 32], strides = [1, 1]} : vector<8x128xf32> to vector<8x32xf32>
    %42 = arith.negf %41 : vector<8x32xf32>
    %43 = math.exp %42 : vector<8x32xf32>
    %cst_18 = arith.constant 1.000000e+00 : f32
    %44 = vector.broadcast %cst_18 : f32 to vector<8x32xf32>
    %45 = arith.addf %44, %43 : vector<8x32xf32>
    %46 = arith.divf %44, %45 : vector<8x32xf32>
    %47 = vector.extract_strided_slice %40 {offsets = [0, 64], sizes = [8, 32], strides = [1, 1]} : vector<8x128xf32> to vector<8x32xf32>
    %48 = math.tanh %47 : vector<8x32xf32>
    %49 = vector.extract_strided_slice %40 {offsets = [0, 96], sizes = [8, 32], strides = [1, 1]} : vector<8x128xf32> to vector<8x32xf32>
    %50 = arith.negf %49 : vector<8x32xf32>
    %51 = math.exp %50 : vector<8x32xf32>
    %cst_19 = arith.constant 1.000000e+00 : f32
    %52 = vector.broadcast %cst_19 : f32 to vector<8x32xf32>
    %53 = arith.addf %52, %51 : vector<8x32xf32>
    %54 = arith.divf %52, %53 : vector<8x32xf32>
    %55 = arith.mulf %46, %48 : vector<8x32xf32>
    %56 = math.tanh %55 : vector<8x32xf32>
    %57 = arith.mulf %54, %56 : vector<8x32xf32>
    %58 = vector.extract_strided_slice %0 {offsets = [4, 0], sizes = [1, 32], strides = [1, 1]} : vector<6x128xf32> to vector<1x32xf32>
    %59 = vector.shape_cast %58 : vector<1x32xf32> to vector<32xf32>
    %60 = vector.shape_cast %59 : vector<32xf32> to vector<1x32xf32>
    %61 = vector.broadcast %60 : vector<1x32xf32> to vector<8x32xf32>
    %62 = arith.mulf %57, %61 : vector<8x32xf32>
    %cst_20 = arith.constant dense<0.000000e+00> : vector<8xf32>
    %63 = vector.multi_reduction <add>, %62, %cst_20 [1] : vector<8x32xf32> to vector<8xf32>
    %64 = vector.shape_cast %63 : vector<8xf32> to vector<8x1xf32>
    %65 = vector.extract_strided_slice %0 {offsets = [5, 0], sizes = [1, 1], strides = [1, 1]} : vector<6x128xf32> to vector<1x1xf32>
    %66 = vector.extract %65[0, 0] : f32 from vector<1x1xf32>
    %67 = vector.broadcast %66 : f32 to vector<8x1xf32>
    %68 = arith.addf %64, %67 : vector<8x1xf32>
    %c0_21 = arith.constant 0 : index
    %c0_22 = arith.constant 0 : index
    %69 = vector.load %arg6[%c0_21, %c0_22] : memref<8x1xf32, #tpu.memory_space<vmem>>, vector<8x1xf32>
    tpu.vector_store %arg6[%c0_21, %c0_22], %68 {strides = array<i32>} : memref<8x1xf32, #tpu.memory_space<vmem>>, vector<8x1xf32>,
    return
  }
  func.func @transform_0(%arg0: i32) -> (i32, i32) {
    %c0_i32 = arith.constant 0 : i32
    %c0_i32_0 = arith.constant 0 : i32
    return %arg0, %c0_i32 : i32, i32
  }
  func.func @transform_1(%arg0: i32) -> (i32, i32) {
    %c0_i32 = arith.constant 0 : i32
    %c0_i32_0 = arith.constant 0 : i32
    return %arg0, %c0_i32 : i32, i32
  }
  func.func @transform_2(%arg0: i32) -> (i32, i32) {
    %c0_i32 = arith.constant 0 : i32
    %c0_i32_0 = arith.constant 0 : i32
    %c0_i32_1 = arith.constant 0 : i32
    return %c0_i32, %c0_i32_0 : i32, i32
  }
  func.func @transform_3(%arg0: i32) -> (i32, i32) {
    %c0_i32 = arith.constant 0 : i32
    %c0_i32_0 = arith.constant 0 : i32
    %c0_i32_1 = arith.constant 0 : i32
    return %c0_i32, %c0_i32_0 : i32, i32
  }
  func.func @transform_4(%arg0: i32) -> (i32, i32) {
    %c0_i32 = arith.constant 0 : i32
    %c0_i32_0 = arith.constant 0 : i32
    %c0_i32_1 = arith.constant 0 : i32
    return %c0_i32, %c0_i32_0 : i32, i32
  }
  func.func @transform_5(%arg0: i32) -> (i32, i32) {
    %c0_i32 = arith.constant 0 : i32
    %c0_i32_0 = arith.constant 0 : i32
    return %arg0, %c0_i32 : i32, i32
  }
}

</mosaic_0001>

<llo_original>
// kernel: tpu_custom_call.1
$region0: #{tpu_custom_call.1}
  #allocation0 [shape = 'u32[]', space=smem, size = 0x4, offset = 0x4, fixed_abs, tag = 'smem constant byte address 0x4 - core index']
  #allocation1 [shape = 'u32[72,128]{1,0:T(1,128)}', space=vmem, size = 0x9000, scoped, tag = 'internal scratch']
  %s0 = inlined_call_operand.vmem [shape: f32[8,16], index: 0, kind: input, shape index: {}]
  %s1 = inlined_call_operand.vmem [shape: f32[8,4], index: 1, kind: input, shape index: {}]
  %s2 = inlined_call_operand.vmem [shape: f32[88,32], index: 2, kind: input, shape index: {}]
  %s3 = inlined_call_operand.vmem [shape: f32[32,128], index: 3, kind: input, shape index: {}]
  %s4 = inlined_call_operand.vmem [shape: f32[6,128], index: 4, kind: input, shape index: {}]
  %s5 = inlined_call_operand.vmem [shape: f32[8,1], index: 5, kind: output, shape index: {}]
  %s6 = sld [smem:[#allocation0]]
  $region30: #{tpu_custom_call.1} parent=0
    _
  %s8 = ssub.s32 1, %s6
  %s9 = scalar_select 0, %s8, %s6
  // Predicated region
  $region2: #{tpu_custom_call.1} parent=0 // pred_check
    _
  $region3: #{tpu_custom_call.1} parent=0 // pred_check_branch
    %11 = sbr.rel (0) target = $region5
  $region4: #{tpu_custom_call.1} parent=0 // pred_region
    _
  $region5: #{tpu_custom_call.1} parent=0 // pred_fallthru
    _
  // Predicated region
  $region6: #{tpu_custom_call.1} parent=0 // pred_check
    _
  $region7: #{tpu_custom_call.1} parent=0 // pred_check_branch
    %13 = sbr.rel (0) target = $region9
  $region8: #{tpu_custom_call.1} parent=0 // pred_region
    _
  $region9: #{tpu_custom_call.1} parent=0 // pred_fallthru
    _
  // Predicated region
  $region10: #{tpu_custom_call.1} parent=0 // pred_check
    _
  $region11: #{tpu_custom_call.1} parent=0 // pred_check_branch
    %15 = sbr.rel (0) target = $region13
  $region12: #{tpu_custom_call.1} parent=0 // pred_region
    _
  $region13: #{tpu_custom_call.1} parent=0 // pred_fallthru
    _
  // Predicated region
  $region14: #{tpu_custom_call.1} parent=0 // pred_check
    _
  $region15: #{tpu_custom_call.1} parent=0 // pred_check_branch
    %17 = sbr.rel (0) target = $region17
  $region16: #{tpu_custom_call.1} parent=0 // pred_region
    _
  $region17: #{tpu_custom_call.1} parent=0 // pred_fallthru
    _
  // Predicated region
  $region18: #{tpu_custom_call.1} parent=0 // pred_check
    _
  $region19: #{tpu_custom_call.1} parent=0 // pred_check_branch
    %19 = sbr.rel (0) target = $region21
  $region20: #{tpu_custom_call.1} parent=0 // pred_region
    _
  $region21: #{tpu_custom_call.1} parent=0 // pred_fallthru
    _
  %v20 = vld [vmem:[%s4] sm:$0x3f]
  %v21 = vld [vmem:[%s2] sm:$0xff]
  %v22 = vld [vmem:[%s2 + $0x8] sm:$0xff]
  %v23 = vld [vmem:[%s2 + $0x10] sm:$0xf]
  %v24 = vld [vmem:[%s0] sm:$0xff]
  %v25 = vld [vmem:[%s1] sm:$0xff]
  %vm26 = vcmask 31744
  %v28 = vsel %vm26, %v25, 0
  %vm30 = vcmask 1043456
  %v32 = vsel %vm30, %v23, 0
  %34 = vmatpush.msra.mxu0 0.0
  %35 = vmatpush.msra.mxu0 0.0
  %36 = vmatpush.msra.mxu0 0.0
  %37 = vmatpush.msra.mxu0 0.0
  %38 = vmatpush.msra.mxu0 0.0
  %39 = vmatpush.msra.mxu0 0.0
  %40 = vmatpush.msra.mxu0 0.0
  %41 = vmatpush.msra.mxu0 0.0
  %42 = vmatpush.msra.mxu0 0.0
  %43 = vmatpush.msra.mxu0 0.0
  %44 = vmatpush.msra.mxu0 0.0
  %45 = vmatpush.msra.mxu0 0.0
  %46 = vmatpush.msra.mxu0 0.0
  %47 = vmatpush.msra.mxu0 0.0
  %48 = vmatpush.msra.mxu0 0.0
  %49 = vmatpush.msra.mxu0 %v32
  %50 = vmatmul.f32.gmra.mxu0 %v28
  %v51 = vpop.f32.mrf.mxu0
  %v52 = vadd.f32 0.0, %v51
  %53 = vdwg.mxu0
  %vm54 = vcmask 130048
  %v56 = vsel %vm54, %v24, 0
  %58 = vmatpush.msra.mxu0 0.0
  %59 = vmatpush.msra.mxu0 0.0
  %60 = vmatpush.msra.mxu0 0.0
  %61 = vmatpush.msra.mxu0 0.0
  %62 = vmatpush.msra.mxu0 0.0
  %63 = vmatpush.msra.mxu0 0.0
  %64 = vmatpush.msra.mxu0 0.0
  %65 = vmatpush.msra.mxu0 0.0
  %66 = vmatpush.msra.mxu0 0.0
  %67 = vmatpush.msra.mxu0 0.0
  %68 = vmatpush.msra.mxu0 0.0
  %69 = vmatpush.msra.mxu0 0.0
  %70 = vmatpush.msra.mxu0 0.0
  %71 = vmatpush.msra.mxu0 0.0
  %72 = vmatpush.msra.mxu0 %v22
  %73 = vmatpush.msra.mxu0 %v21
  %74 = vmatmul.f32.gmra.mxu0 %v56
  %v75 = vpop.f32.mrf.mxu0
  %v76 = vadd.f32 %v52, %v75
  %77 = vdwg.mxu0
  %v78 = vperm.slane %v20, 0
  %v79 = vadd.f32 %v76, %v78
  %v80 = vmax.f32 %v79, 0.0
  %v81 = vld [vmem:[%s2 + $0x18] sm:$0xff]
  %v82 = vld [vmem:[%s2 + $0x20] sm:$0xff]
  %v83 = vld [vmem:[%s2 + $0x28] sm:$0xff]
  %v84 = vld [vmem:[%s2 + $0x30] sm:$0xff]
  %v85 = vperm.slane %v20, 1
  %vm86 = vcmask 261120
  %v88 = vsel %vm86, %v80, 0
  %90 = vmatpush.msra.mxu0 0.0
  %91 = vmatpush.msra.mxu0 0.0
  %92 = vmatpush.msra.mxu0 0.0
  %93 = vmatpush.msra.mxu0 0.0
  %94 = vmatpush.msra.mxu0 0.0
  %95 = vmatpush.msra.mxu0 0.0
  %96 = vmatpush.msra.mxu0 0.0
  %97 = vmatpush.msra.mxu0 0.0
  %98 = vmatpush.msra.mxu0 0.0
  %99 = vmatpush.msra.mxu0 0.0
  %100 = vmatpush.msra.mxu0 0.0
  %101 = vmatpush.msra.mxu0 0.0
  %102 = vmatpush.msra.mxu0 %v84
  %103 = vmatpush.msra.mxu0 %v83
  %104 = vmatpush.msra.mxu0 %v82
  %105 = vmatpush.msra.mxu0 %v81
  %106 = vmatmul.f32.gmra.mxu0 %v88
  %v107 = vpop.f32.mrf.mxu0
  %v108 = vadd.f32 %v85, %v107
  %109 = vdwg.mxu0
  %v110 = vmax.f32 %v108, 0.0
  %v111 = vld [vmem:[%s2 + $0x38] sm:$0xff]
  %v112 = vld [vmem:[%s2 + $0x40] sm:$0xff]
  %v113 = vld [vmem:[%s2 + $0x48] sm:$0xff]
  %v114 = vld [vmem:[%s2 + $0x50] sm:$0xff]
  %v115 = vperm.slane %v20, 2
  %v117 = vsel %vm86, %v110, 0
  %119 = vmatpush.msra.mxu0 0.0
  %120 = vmatpush.msra.mxu0 0.0
  %121 = vmatpush.msra.mxu0 0.0
  %122 = vmatpush.msra.mxu0 0.0
  %123 = vmatpush.msra.mxu0 0.0
  %124 = vmatpush.msra.mxu0 0.0
  %125 = vmatpush.msra.mxu0 0.0
  %126 = vmatpush.msra.mxu0 0.0
  %127 = vmatpush.msra.mxu0 0.0
  %128 = vmatpush.msra.mxu0 0.0
  %129 = vmatpush.msra.mxu0 0.0
  %130 = vmatpush.msra.mxu0 0.0
  %131 = vmatpush.msra.mxu0 %v114
  %132 = vmatpush.msra.mxu0 %v113
  %133 = vmatpush.msra.mxu0 %v112
  %134 = vmatpush.msra.mxu0 %v111
  %135 = vmatmul.f32.gmra.mxu0 %v117
  %v136 = vpop.f32.mrf.mxu0
  %v137 = vadd.f32 %v115, %v136
  %138 = vdwg.mxu0
  %v139 = vmax.f32 %v137, 0.0
  %v140 = vld [vmem:[%s3] sm:$0xff]
  %v141 = vld [vmem:[%s3 + $0x8] sm:$0xff]
  %v142 = vld [vmem:[%s3 + $0x10] sm:$0xff]
  %v143 = vld [vmem:[%s3 + $0x18] sm:$0xff]
  %v144 = vperm.slane %v20, 3
  %v146 = vsel %vm86, %v139, 0
  %148 = vmatpush.msra.mxu0 0.0
  %149 = vmatpush.msra.mxu0 0.0
  %150 = vmatpush.msra.mxu0 0.0
  %151 = vmatpush.msra.mxu0 0.0
  %152 = vmatpush.msra.mxu0 0.0
  %153 = vmatpush.msra.mxu0 0.0
  %154 = vmatpush.msra.mxu0 0.0
  %155 = vmatpush.msra.mxu0 0.0
  %156 = vmatpush.msra.mxu0 0.0
  %157 = vmatpush.msra.mxu0 0.0
  %158 = vmatpush.msra.mxu0 0.0
  %159 = vmatpush.msra.mxu0 0.0
  %160 = vmatpush.msra.mxu0 %v143
  %161 = vmatpush.msra.mxu0 %v142
  %162 = vmatpush.msra.mxu0 %v141
  %163 = vmatpush.msra.mxu0 %v140
  %164 = vmatmul.f32.gmra.mxu0 %v146
  %v165 = vpop.f32.mrf.mxu0
  %v166 = vadd.f32 %v144, %v165
  %167 = vdwg.mxu0
  %v168 = vxor.u32 %v166, 2147483648
  %v169 = vmul.f32 %v168, 1.442695
  %v170 = vpow.pop %v169
  %v171 = vadd.f32 %v170, 1.0
  %v172 = vrcp.pop %v171
  %v173 = vmul.f32 %v171, %v172
  %v174 = vsub.f32 1.0, %v173
  %v175 = vmul.f32 %v172, %v174
  %v176 = vadd.f32 %v172, %v175
  %vm177 = vweird.f32 %v171
  %vm178 = vweird.f32 %v172
  %vm179 = vmor %vm177, %vm178
  %v180 = vsel %vm179, %v172, %v176
  %v181 = vand.u32 2147483647, %v171
  %vm182 = vcmp.eq.f32.partialorder %v181, 8.507059e+37
  %v183 = vand.u32 %v171, 2147483648
  %v184 = vor.u32 1.1754944e-38, %v183
  %v185 = vsel %vm182, %v184, %v180
  %v186 = vmul.f32 1.0, %v185
  %v187 = vtanh.pop %v166
  %189 = vrot.lane.b32.xlu0 %v187, 64
  %v190 = vpop.permute.xlu0 %189
  %v192 = vmul.f32 %v186, %v190
  %v193 = vtanh.pop %v192
  %195 = vrot.lane.b32.xlu0 %v193, 96
  %v196 = vpop.permute.xlu0 %195
  %v198 = vmul.f32 %v186, %v196
  %v199 = vperm.slane %v20, 4
  %201 = vrot.lane.b32.xlu0 %v199, 96
  %v202 = vpop.permute.xlu0 %201
  %v204 = vmul.f32 %v198, %v202
  %206 = vrot.lane.b32.xlu0 %v204, 32
  %v207 = vpop.permute.xlu0 %206
  %v209 = vsel %vm86, %v207, 0.0
  %210 = vadd.xlane.f32.xlu0 %v209
  %v211 = vpop.xlane.xlu0 %210
  %v212 = vrot.slane %v20, 5
  %s213 = vtos %v212
  %v214 = vstv %s213
  %v215 = vadd.f32 %v211, %v214
  %vm216 = vcmask 7168
  %217 = vst.msk [vmem:[%s5] sm:$0xff] %vm216, %v215
  // Predicated region
  $region22: #{tpu_custom_call.1} parent=0 // pred_check
    _
  $region23: #{tpu_custom_call.1} parent=0 // pred_check_branch
    %219 = sbr.rel (0) target = $region25
  $region24: #{tpu_custom_call.1} parent=0 // pred_region
    _
  $region25: #{tpu_custom_call.1} parent=0 // pred_fallthru
    _
  // Predicated region
  $region26: #{tpu_custom_call.1} parent=0 // pred_check
    _
  $region27: #{tpu_custom_call.1} parent=0 // pred_check_branch
    %221 = sbr.rel (0) target = $region29
  $region28: #{tpu_custom_call.1} parent=0 // pred_region
    _
  $region29: #{tpu_custom_call.1} parent=0 // pred_fallthru
    _

</llo_original>
